<compile_context>
chip_gen: v7x
topology: tpu7x:2x2x1
jax: 0.10.0
libtpu: 0.0.40
codegen_flags: <defaults>
</compile_context>

<pallas_src>
import functools

import jax
import jax.numpy as jnp
from jax import lax
from jax.experimental import pallas as pl
from jax.experimental.pallas import tpu as pltpu

TEMPERATURE = 0.07
_EPS = 1e-12  # matches torch.nn.functional.normalize eps


def _infonce_kernel(imgq_ref, txtk_ref, lse_i2t_ref, colsum_ref, acc_ref, *,
                    acc_width):
    j = pl.program_id(1)
    nj = pl.num_programs(1)

    @pl.when(j == 0)
    def _():
        acc_ref[...] = jnp.zeros_like(acc_ref)

    # One MXU tile per step: S = (img_n / T) @ txt_n^T  -> (tq, tk), f32 acc.
    # NT contraction (both operands contract their last dim): no transpose.
    s = lax.dot_general(
        imgq_ref[...], txtk_ref[...],
        dimension_numbers=(((1,), (1,)), ((), ())),
        preferred_element_type=jnp.float32)

    # Cosine logits are bounded by 1/temperature, so exp() is safe in f32
    # without a max shift: one exp per element, no max reductions.
    e = jnp.exp(s)
    tq, tk = e.shape

    # i2t denominators: per-row sums, accumulated across key tiles.
    if acc_width == 128:
        # (tq, tk) -> (tq, tk//128, 128): middle-axis sum is plain VPU adds,
        # keeping the per-step work off the XLU and off narrow 1-lane vregs.
        acc_ref[...] += jnp.sum(e.reshape(tq, tk // 128, 128), axis=1)
    else:
        acc_ref[...] += jnp.sum(e, axis=1, keepdims=True)

    # t2i partial denominators: per-column sum of this tile; one (1, tk) slab
    # per (query-tile, key-tile), summed over query tiles in the wrapper so
    # the query axis can stay "parallel" (no shared cross-core accumulator).
    col = jnp.sum(e, axis=0, keepdims=True)            # (1, tk)
    colsum_ref[...] = col.reshape(1, 1, tk)

    @pl.when(j == nj - 1)
    def _():
        rowsum = jnp.sum(acc_ref[...], axis=1, keepdims=True)   # (tq, 1)
        lse_i2t_ref[...] = jnp.log(rowsum)


def _pick_tile(n, target, quantum):
    """Largest divisor of n that is a multiple of `quantum` (then 8) and
    <= target; falls back to n itself (single tile)."""
    quanta = (quantum,) if quantum == 8 else (quantum, 8)
    for q in quanta:
        t = min(target, n)
        t -= t % q
        while t >= q:
            if n % t == 0:
                return t
            t -= q
    return n


def infonce_loss(image_features, text_features, temperature=TEMPERATURE,
                 mxu_dtype=jnp.bfloat16, tile_q=512, tile_k=256):
    """CLIP InfoNCE loss (mean of image->text and text->image CE).

    tile_q: keys are re-streamed per query tile, so this sets arithmetic
    intensity — use 512-1024 on v6e/v7x, >= 256 on v5e.  tile_k=256 matches
    the 2x256x256 MXU on v6e/v7x.  mxu_dtype=bf16 keeps the MXU at full rate
    on every generation; accumulation and all reductions stay f32.
    """
    B, D = image_features.shape
    assert text_features.shape == (B, D)
    inv_temp = 1.0 / float(temperature)
    # The kernel skips the softmax max-shift because cosine logits are bounded
    # by 1/temperature; keep that bound far from f32 exp overflow (~88).
    assert inv_temp < 80.0, (
        "infonce_loss: requires 1/temperature < 80 (no-max-shift exp)")

    # ---- Hoisted one-shot O(B*D) XLA preprocessing -------------------------
    def _normalize(x):
        x = x.astype(jnp.float32)
        ss = jnp.sum(x * x, axis=1, keepdims=True)
        return x * lax.rsqrt(jnp.maximum(ss, _EPS * _EPS))

    img_n = _normalize(image_features)                 # (B, D) f32 unit rows
    txt_n = _normalize(text_features)                  # (B, D) f32 unit rows

    # Positive-pair (diagonal) logits, exact in f32 (shared by both CE terms).
    diag = jnp.sum(img_n * txt_n, axis=1) * inv_temp   # (B,)

    # Fold 1/T into the query (image) side; cast MXU operands once, here.
    img_q = (img_n * inv_temp).astype(mxu_dtype)
    txt_k = txt_n.astype(mxu_dtype)

    # Zero-pad the feature (lane) axis to a multiple of 128: exact for the
    # dot products, keeps MXU/VPU lanes full for small D.
    if D % 128 != 0:
        pad = (-D) % 128
        img_q = jnp.pad(img_q, ((0, 0), (0, pad)))
        txt_k = jnp.pad(txt_k, ((0, 0), (0, pad)))
        D += pad

    tq = _pick_tile(B, tile_q, 8)
    tk = _pick_tile(B, tile_k, 128)
    grid = (B // tq, B // tk)
    acc_width = 128 if tk % 128 == 0 else 1

    kernel = functools.partial(_infonce_kernel, acc_width=acc_width)

    lse_i2t, colsum = pl.pallas_call(
        kernel,
        out_shape=(
            jax.ShapeDtypeStruct((B, 1), jnp.float32),           # log row-sums
            jax.ShapeDtypeStruct((grid[0], 1, B), jnp.float32),  # partial col-sums
        ),
        grid=grid,
        in_specs=[
            pl.BlockSpec((tq, D), lambda i, j: (i, 0)),  # image queries (x 1/T)
            pl.BlockSpec((tk, D), lambda i, j: (j, 0)),  # text keys (streamed)
        ],
        out_specs=(
            pl.BlockSpec((tq, 1), lambda i, j: (i, 0)),
            pl.BlockSpec((1, 1, tk), lambda i, j: (i, 0, j)),
        ),
        scratch_shapes=[pltpu.VMEM((tq, acc_width), jnp.float32)],
        compiler_params=pltpu.CompilerParams(
            dimension_semantics=("parallel", "arbitrary")),
    )(img_q, txt_k)

    # Finish the text->image LSE: tiny XLA reduce over the query-tile partials.
    lse_t2i = jnp.log(jnp.sum(colsum[:, 0, :], axis=0))          # (B,)
    lse_i2t = lse_i2t[:, 0]                                      # (B,)

    # loss = (mean(lse_i2t - diag) + mean(lse_t2i - diag)) / 2
    return (jnp.sum(lse_i2t) + jnp.sum(lse_t2i) - 2.0 * jnp.sum(diag)) / (2.0 * B)


def _reference_loss(image_features, text_features, temperature=TEMPERATURE):
    # Plain-JAX reference mirroring the PyTorch module.
    eps = 1e-12
    img = image_features / jnp.maximum(
        jnp.linalg.norm(image_features, axis=1, keepdims=True), eps)
    txt = text_features / jnp.maximum(
        jnp.linalg.norm(text_features, axis=1, keepdims=True), eps)
    logits = jnp.matmul(img, txt.T, precision=lax.Precision.HIGHEST) / temperature
    labels = jnp.arange(logits.shape[0])

    def ce(lg):
        lse = jax.scipy.special.logsumexp(lg, axis=1)
        return jnp.mean(lse - lg[jnp.arange(lg.shape[0]), labels])

    return (ce(logits) + ce(logits.T)) / 2.0


if __name__ == "__main__":
    key = jax.random.PRNGKey(0)
    k1, k2 = jax.random.split(key)

    # Small shape consistent with the module: batch=8, feature_dim=32.
    B, D = 8, 32
    image_features = jax.random.normal(k1, (B, D), dtype=jnp.float32)
    text_features = jax.random.normal(k2, (B, D), dtype=jnp.float32)

    ref = _reference_loss(image_features, text_features)

    # Exact-path check (f32 MXU operands).
    loss_f32 = infonce_loss(image_features, text_features,
                            mxu_dtype=jnp.float32)
    jax.block_until_ready(loss_f32)
    assert jnp.allclose(loss_f32, ref, atol=1e-4, rtol=1e-4), (loss_f32, ref)

    # Default path (bf16 MXU operands): loose tolerance for ~2^-8 logit quant.
    loss_bf16 = infonce_loss(image_features, text_features)
    jax.block_until_ready(loss_bf16)
    assert jnp.allclose(loss_bf16, ref, atol=1e-1, rtol=5e-2), (loss_bf16, ref)

    # Multi-tile grid check (exercises accumulator + partial col-sum logic).
    B2, D2 = 256, 64
    k3, k4 = jax.random.split(k2)
    img2 = jax.random.normal(k3, (B2, D2), dtype=jnp.float32)
    txt2 = jax.random.normal(k4, (B2, D2), dtype=jnp.float32)
    loss2 = infonce_loss(img2, txt2, mxu_dtype=jnp.float32,
                         tile_q=128, tile_k=128)
    jax.block_until_ready(loss2)
    ref2 = _reference_loss(img2, txt2)
    assert jnp.allclose(loss2, ref2, atol=1e-4, rtol=1e-4), (loss2, ref2)

    print("KERNEL_OK")
</pallas_src>

<mosaic_0001>
module attributes {stable_mosaic.version = 11 : i64} {
  func.func @_infonce_kernel(%arg0: i32, %arg1: i32, %arg2: memref<8x128xf32, #tpu.memory_space<vmem>>, %arg3: memref<8x128xf32, #tpu.memory_space<vmem>>, %arg4: memref<8x1xf32, #tpu.memory_space<vmem>>, %arg5: memref<1x1x8xf32, #tpu.memory_space<vmem>>, %arg6: memref<8x1xf32, #tpu.memory_space<vmem>>) attributes {dimension_semantics = [#tpu.dimension_semantics<parallel>, #tpu.dimension_semantics<arbitrary>], iteration_bounds = array<i64: 1, 1>, scalar_prefetch = 0 : i64, scratch_operands = 1 : i64, tpu.core_type = #tpu.core_type<tc>, window_params = [{transform_indices = @transform_0, window_bounds = array<i64: 8, 128>}, {transform_indices = @transform_1, window_bounds = array<i64: 8, 128>}, {transform_indices = @transform_2, window_bounds = array<i64: 8, 1>}, {transform_indices = @transform_3, window_bounds = array<i64: 1, 1, 8>}]} {
    %c0_i32 = arith.constant 0 : i32
    %0 = arith.cmpi eq, %arg1, %c0_i32 : i32
    %1 = arith.extui %0 : i1 to i32
    %c0_i32_0 = arith.constant 0 : i32
    %2 = arith.cmpi ne, %1, %c0_i32_0 : i32
    scf.if %2 {
      %cst_15 = arith.constant 0.000000e+00 : f32
      %19 = vector.broadcast %cst_15 : f32 to vector<8x1xf32>
      %c0_16 = arith.constant 0 : index
      %c0_17 = arith.constant 0 : index
      %20 = vector.load %arg6[%c0_16, %c0_17] : memref<8x1xf32, #tpu.memory_space<vmem>>, vector<8x1xf32>
      tpu.vector_store %arg6[%c0_16, %c0_17], %19 {strides = array<i32>} : memref<8x1xf32, #tpu.memory_space<vmem>>, vector<8x1xf32>,
    } else {
    }
    %c0 = arith.constant 0 : index
    %c0_1 = arith.constant 0 : index
    %3 = vector.load %arg2[%c0, %c0_1] : memref<8x128xf32, #tpu.memory_space<vmem>>, vector<8x128xf32>
    %c0_2 = arith.constant 0 : index
    %c0_3 = arith.constant 0 : index
    %4 = vector.load %arg3[%c0_2, %c0_3] : memref<8x128xf32, #tpu.memory_space<vmem>>, vector<8x128xf32>
    %cst = arith.constant dense<0.000000e+00> : vector<8x8xf32>
    %5 = tpu.matmul %3, %4, %cst {dimension_numbers = #tpu.dot_dimension_numbers<[1], [1], [0], [0], [0, 0, 1, 0], [], []>} : vector<8x128xf32>, vector<8x128xf32>, vector<8x8xf32> -> vector<8x8xf32>
    %6 = math.exp %5 : vector<8x8xf32>
    %c0_4 = arith.constant 0 : index
    %c0_5 = arith.constant 0 : index
    %7 = vector.load %arg6[%c0_4, %c0_5] : memref<8x1xf32, #tpu.memory_space<vmem>>, vector<8x1xf32>
    %cst_6 = arith.constant dense<0.000000e+00> : vector<8xf32>
    %8 = vector.multi_reduction <add>, %6, %cst_6 [1] : vector<8x8xf32> to vector<8xf32>
    %9 = vector.shape_cast %8 : vector<8xf32> to vector<8x1xf32>
    %10 = arith.addf %7, %9 : vector<8x1xf32>
    %c0_7 = arith.constant 0 : index
    %c0_8 = arith.constant 0 : index
    %11 = vector.load %arg6[%c0_7, %c0_8] : memref<8x1xf32, #tpu.memory_space<vmem>>, vector<8x1xf32>
    tpu.vector_store %arg6[%c0_7, %c0_8], %10 {strides = array<i32>} : memref<8x1xf32, #tpu.memory_space<vmem>>, vector<8x1xf32>,
    %cst_9 = arith.constant dense<0.000000e+00> : vector<8xf32>
    %12 = vector.multi_reduction <add>, %6, %cst_9 [0] : vector<8x8xf32> to vector<8xf32>
    %13 = vector.shape_cast %12 : vector<8xf32> to vector<1x8xf32>
    %14 = vector.shape_cast %13 : vector<1x8xf32> to vector<1x1x8xf32>
    %c0_10 = arith.constant 0 : index
    %c0_11 = arith.constant 0 : index
    %c0_12 = arith.constant 0 : index
    %15 = vector.load %arg5[%c0_10, %c0_11, %c0_12] : memref<1x1x8xf32, #tpu.memory_space<vmem>>, vector<1x1x8xf32>
    tpu.vector_store %arg5[%c0_10, %c0_11, %c0_12], %14 {strides = array<i32>} : memref<1x1x8xf32, #tpu.memory_space<vmem>>, vector<1x1x8xf32>,
    %c0_i32_13 = arith.constant 0 : i32
    %16 = arith.cmpi eq, %arg1, %c0_i32_13 : i32
    %17 = arith.extui %16 : i1 to i32
    %c0_i32_14 = arith.constant 0 : i32
    %18 = arith.cmpi ne, %17, %c0_i32_14 : i32
    scf.if %18 {
      %c0_15 = arith.constant 0 : index
      %c0_16 = arith.constant 0 : index
      %19 = vector.load %arg6[%c0_15, %c0_16] : memref<8x1xf32, #tpu.memory_space<vmem>>, vector<8x1xf32>
      %cst_17 = arith.constant dense<0.000000e+00> : vector<8xf32>
      %20 = vector.multi_reduction <add>, %19, %cst_17 [1] : vector<8x1xf32> to vector<8xf32>
      %21 = vector.shape_cast %20 : vector<8xf32> to vector<8x1xf32>
      %22 = math.log %21 : vector<8x1xf32>
      %c0_18 = arith.constant 0 : index
      %c0_19 = arith.constant 0 : index
      %23 = vector.load %arg4[%c0_18, %c0_19] : memref<8x1xf32, #tpu.memory_space<vmem>>, vector<8x1xf32>
      tpu.vector_store %arg4[%c0_18, %c0_19], %22 {strides = array<i32>} : memref<8x1xf32, #tpu.memory_space<vmem>>, vector<8x1xf32>,
    } else {
    }
    return
  }
  func.func @transform_0(%arg0: i32, %arg1: i32) -> (i32, i32) {
    %c0_i32 = arith.constant 0 : i32
    %c0_i32_0 = arith.constant 0 : i32
    return %arg0, %c0_i32 : i32, i32
  }
  func.func @transform_1(%arg0: i32, %arg1: i32) -> (i32, i32) {
    %c0_i32 = arith.constant 0 : i32
    %c0_i32_0 = arith.constant 0 : i32
    return %arg1, %c0_i32 : i32, i32
  }
  func.func @transform_2(%arg0: i32, %arg1: i32) -> (i32, i32) {
    %c0_i32 = arith.constant 0 : i32
    %c0_i32_0 = arith.constant 0 : i32
    return %arg0, %c0_i32 : i32, i32
  }
  func.func @transform_3(%arg0: i32, %arg1: i32) -> (i32, i32, i32) {
    %c0_i32 = arith.constant 0 : i32
    %c0_i32_0 = arith.constant 0 : i32
    return %arg0, %c0_i32, %arg1 : i32, i32, i32
  }
}

</mosaic_0001>

<llo_original>
// kernel: tpu_custom_call.1
$region0: #{tpu_custom_call.1}
  #allocation0 [shape = 'u32[]', space=smem, size = 0x4, offset = 0x4, fixed_abs, tag = 'smem constant byte address 0x4 - core index']
  #allocation1 [shape = 'u32[144,128]{1,0:T(1,128)}', space=vmem, size = 0x12000, scoped, tag = 'internal scratch']
  #allocation2 [shape = 'f32[8,1]{1,0:T(8,128)}', space=vmem, size = 0x1000, scoped, tag = 'scratch operand']
  %s0 = inlined_call_operand.hbm [shape: f32[8,128], index: 0, kind: input, shape index: {}]
  %s1 = inlined_call_operand.hbm [shape: f32[8,128], index: 1, kind: input, shape index: {}]
  %s2 = inlined_call_operand.vmem [shape: f32[8,1], index: 2, kind: output, shape index: {0}]
  %s3 = inlined_call_operand.hbm [shape: f32[1,1,8], index: 3, kind: output, shape index: {1}]
  %4 = xla_tuple %s2, %s3
  %s5 = sld [smem:[#allocation0]]
  $region42: #{tpu_custom_call.1} parent=0
    _
  %s7 = ssub.s32 1, %s5
  %s8 = scalar_select 0, %s7, %s5
  $region1: #{tpu_custom_call.1} parent=0
    #allocation3 [shape = 'u8[4096]{0}', space=vmem, size = 0x1000, scoped, tag = 'input window, operand 0, single buffered']
    #allocation4 [shape = 's32[1]{0}', space=sflag, size = 0x4, scoped, tag = 'scoped memory for tpu_custom_call.1']
    #allocation5 [shape = 's32[1]{0}', space=sflag, size = 0x4, scoped, tag = 'scoped memory for tpu_custom_call.1']
    #allocation6 [shape = 'u8[4096]{0}', space=vmem, size = 0x1000, scoped, tag = 'input window, operand 1, single buffered']
    #allocation7 [shape = 's32[1]{0}', space=sflag, size = 0x4, scoped, tag = 'scoped memory for tpu_custom_call.1']
    #allocation8 [shape = 'u8[512]{0}', space=vmem, size = 0x400, scoped, tag = 'output window, operand 1, single buffered']
    %9 = vsyncpa [#allocation4], 0
    %10 = vsyncpa [#allocation7], 0
    %11 = vsyncpa [#allocation5], 0
    // Predicated region
    $region2: #{tpu_custom_call.1} parent=1 // pred_check
      _
    $region3: #{tpu_custom_call.1} parent=1 // pred_check_branch
      %13 = sbr.rel (0) target = $region5
    $region4: #{tpu_custom_call.1} parent=1 // pred_region
      %s15 = ssub.s32 128, 128
      %16 = vsyncadd [#allocation4], %s15
      %s18 = sshll.u32 [#allocation3], 4
      %s19 = int_to_ptr.vmem [resolvable:$true] %s18
      %21 = dma.hbm_to_vmem [thread:$0]  %s0, 128, %s19, [#allocation4]
    $region5: #{tpu_custom_call.1} parent=1 // pred_fallthru
      _
    // Predicated region
    $region6: #{tpu_custom_call.1} parent=1 // pred_check
      _
    $region7: #{tpu_custom_call.1} parent=1 // pred_check_branch
      %23 = sbr.rel (0) target = $region9
    $region8: #{tpu_custom_call.1} parent=1 // pred_region
      %s25 = ssub.s32 128, 128
      %26 = vsyncadd [#allocation7], %s25
      %s28 = sshll.u32 [#allocation6], 4
      %s29 = int_to_ptr.vmem [resolvable:$true] %s28
      %31 = dma.hbm_to_vmem [thread:$0]  %s1, 128, %s29, [#allocation7]
    $region9: #{tpu_custom_call.1} parent=1 // pred_fallthru
      _
    // Predicated region
    $region10: #{tpu_custom_call.1} parent=1 // pred_check
      _
    $region11: #{tpu_custom_call.1} parent=1 // pred_check_branch
      %33 = sbr.rel (0) target = $region13
    $region12: #{tpu_custom_call.1} parent=1 // pred_region
      %34 = dma.done [#allocation4], 128
    $region13: #{tpu_custom_call.1} parent=1 // pred_fallthru
      _
    // Predicated region
    $region14: #{tpu_custom_call.1} parent=1 // pred_check
      _
    $region15: #{tpu_custom_call.1} parent=1 // pred_check_branch
      %36 = sbr.rel (0) target = $region17
    $region16: #{tpu_custom_call.1} parent=1 // pred_region
      %37 = dma.done [#allocation7], 128
    $region17: #{tpu_custom_call.1} parent=1 // pred_fallthru
      _
    %p38 = scmp.eq.s32.totalorder 0, 0
    // Predicated region
    $region18: #{tpu_custom_call.1} parent=1 // pred_check
      %p39 = pneg %p38
    $region19: #{tpu_custom_call.1} parent=1 // pred_check_branch
      %41 = sbr.rel (%p39) target = $region21
    $region20: #{tpu_custom_call.1} parent=1 // pred_region
      %vm42 = vcmask 7168
      %43 = vst.msk [vmem:[#allocation2] sm:$0xff] %vm42, 0.0
    $region21: #{tpu_custom_call.1} parent=1 // pred_fallthru
      _
    %v44 = vld [vmem:[#allocation3] sm:$0xff]
    %v45 = vld [vmem:[#allocation6] sm:$0xff]
    %46 = vmatprep.subr.mxu0 0.0
    %47 = vmatpush1.xpose.msra.mxu0 %v45
    %48 = vmatprep.subr.mxu0 0.0
    %49 = vmatpush1.xpose.msra.mxu0 0.0
    %50 = vmatprep.subr.mxu0 0.0
    %51 = vmatpush1.xpose.msra.mxu0 0.0
    %52 = vmatprep.subr.mxu0 0.0
    %53 = vmatpush1.xpose.msra.mxu0 0.0
    %54 = vmatprep.subr.mxu0 0.0
    %55 = vmatpush1.xpose.msra.mxu0 0.0
    %56 = vmatprep.subr.mxu0 0.0
    %57 = vmatpush1.xpose.msra.mxu0 0.0
    %58 = vmatprep.subr.mxu0 0.0
    %59 = vmatpush1.xpose.msra.mxu0 0.0
    %60 = vmatprep.subr.mxu0 0.0
    %61 = vmatpush1.xpose.msra.mxu0 0.0
    %62 = vmatprep.subr.mxu0 0.0
    %63 = vmatpush1.xpose.msra.mxu0 0.0
    %64 = vmatprep.subr.mxu0 0.0
    %65 = vmatpush1.xpose.msra.mxu0 0.0
    %66 = vmatprep.subr.mxu0 0.0
    %67 = vmatpush1.xpose.msra.mxu0 0.0
    %68 = vmatprep.subr.mxu0 0.0
    %69 = vmatpush1.xpose.msra.mxu0 0.0
    %70 = vmatprep.subr.mxu0 0.0
    %71 = vmatpush1.xpose.msra.mxu0 0.0
    %72 = vmatprep.subr.mxu0 0.0
    %73 = vmatpush1.xpose.msra.mxu0 0.0
    %74 = vmatprep.subr.mxu0 0.0
    %75 = vmatpush1.xpose.msra.mxu0 0.0
    %76 = vmatprep.subr.mxu0 0.0
    %77 = vmatpush1.xpose.msra.mxu0 0.0
    %78 = vmatprep.subr.mxu0 0.0
    %79 = vmatpush1.xpose.msra.mxu0 0.0
    %80 = vmatprep.subr.mxu0 0.0
    %81 = vmatpush1.xpose.msra.mxu0 0.0
    %82 = vmatprep.subr.mxu0 0.0
    %83 = vmatpush1.xpose.msra.mxu0 0.0
    %84 = vmatprep.subr.mxu0 0.0
    %85 = vmatpush1.xpose.msra.mxu0 0.0
    %86 = vmatprep.subr.mxu0 0.0
    %87 = vmatpush1.xpose.msra.mxu0 0.0
    %88 = vmatprep.subr.mxu0 0.0
    %89 = vmatpush1.xpose.msra.mxu0 0.0
    %90 = vmatprep.subr.mxu0 0.0
    %91 = vmatpush1.xpose.msra.mxu0 0.0
    %92 = vmatprep.subr.mxu0 0.0
    %93 = vmatpush1.xpose.msra.mxu0 0.0
    %94 = vmatprep.subr.mxu0 0.0
    %95 = vmatpush1.xpose.msra.mxu0 0.0
    %96 = vmatprep.subr.mxu0 0.0
    %97 = vmatpush1.xpose.msra.mxu0 0.0
    %98 = vmatprep.subr.mxu0 0.0
    %99 = vmatpush1.xpose.msra.mxu0 0.0
    %100 = vmatprep.subr.mxu0 0.0
    %101 = vmatpush1.xpose.msra.mxu0 0.0
    %102 = vmatprep.subr.mxu0 0.0
    %103 = vmatpush1.xpose.msra.mxu0 0.0
    %104 = vmatprep.subr.mxu0 0.0
    %105 = vmatpush1.xpose.msra.mxu0 0.0
    %106 = vmatprep.subr.mxu0 0.0
    %107 = vmatpush1.xpose.msra.mxu0 0.0
    %108 = vmatprep.subr.mxu0 0.0
    %109 = vmatpush1.xpose.msra.mxu0 0.0
    %110 = vmatprep.mubr.f32.mxu0 0.0
    %111 = vmatmul.mubr.f32.gmra.mrb[0].mxu0 %v44
    %v112 = vpop.f32.mrb[0].mxu0
    %v113 = vadd.f32 0.0, %v112
    %v114 = vpop.f32.mrb[0].mxu0
    %115 = vdwg.mxu0
    %v116 = vmul.f32 %v113, 1.442695
    %v117 = vpow.pop %v116
    %v118 = vld [vmem:[#allocation2] sm:$0xff]
    %vm119 = vcmask 64512
    %v120 = vsel %vm119, %v117, 0.0
    %121 = vadd.xlane.f32.xlu0 %v120
    %v122 = vpop.xlane.xlu0 %121
    %v123 = vadd.f32 %v118, %v122
    %vm124 = vcmask 7168
    %125 = vst.msk [vmem:[#allocation2] sm:$0xff] %vm124, %v123
    %v126 = vrot.slane %v120, 4
    %v127 = vadd.f32 %v120, %v126
    %v128 = vrot.slane %v127, 2
    %v129 = vadd.f32 %v127, %v128
    %v130 = vrot.slane %v129, 1
    %v131 = vadd.f32 %v129, %v130
    %vm132 = vcmask 57344
    %133 = vst.msk [vmem:[#allocation8] sm:$0x1] %vm132, %v131
    // Predicated region
    $region22: #{tpu_custom_call.1} parent=1 // pred_check
      %p134 = pneg %p38
    $region23: #{tpu_custom_call.1} parent=1 // pred_check_branch
      %136 = sbr.rel (%p134) target = $region25
    $region24: #{tpu_custom_call.1} parent=1 // pred_region
      %v137 = vld [vmem:[#allocation2] sm:$0xff]
      %v138 = vadd.f32 %v137, 0.0
      %v139 = vlog2.pop %v138
      %v140 = vmul.f32 %v139, 0.6931472
      %141 = vst.msk [vmem:[%s2] sm:$0xff] %vm124, %v140
    $region25: #{tpu_custom_call.1} parent=1 // pred_fallthru
      _
    // Predicated region
    $region26: #{tpu_custom_call.1} parent=1 // pred_check
      _
    $region27: #{tpu_custom_call.1} parent=1 // pred_check_branch
      %143 = sbr.rel (0) target = $region29
    $region28: #{tpu_custom_call.1} parent=1 // pred_region
      _
    $region29: #{tpu_custom_call.1} parent=1 // pred_fallthru
      _
    // Predicated region
    $region30: #{tpu_custom_call.1} parent=1 // pred_check
      _
    $region31: #{tpu_custom_call.1} parent=1 // pred_check_branch
      %145 = sbr.rel (0) target = $region33
    $region32: #{tpu_custom_call.1} parent=1 // pred_region
      %s147 = ssub.s32 16, 16
      %148 = vsyncadd [#allocation5], %s147
      %s150 = sshll.u32 [#allocation8], 4
      %s151 = int_to_ptr.vmem [resolvable:$true] %s150
      %153 = dma.vmem_to_hbm [thread:$0]  %s151, 16, %s3, [#allocation5]
    $region33: #{tpu_custom_call.1} parent=1 // pred_fallthru
      _
    // Predicated region
    $region34: #{tpu_custom_call.1} parent=1 // pred_check
      _
    $region35: #{tpu_custom_call.1} parent=1 // pred_check_branch
      %155 = sbr.rel (0) target = $region37
    $region36: #{tpu_custom_call.1} parent=1 // pred_region
      _
    $region37: #{tpu_custom_call.1} parent=1 // pred_fallthru
      _
    // Predicated region
    $region38: #{tpu_custom_call.1} parent=1 // pred_check
      _
    $region39: #{tpu_custom_call.1} parent=1 // pred_check_branch
      %157 = sbr.rel (0) target = $region41
    $region40: #{tpu_custom_call.1} parent=1 // pred_region
      %158 = dma.done [#allocation5], 16
    $region41: #{tpu_custom_call.1} parent=1 // pred_fallthru
      _
    %159 = vsyncpa [#allocation4], 1
    %160 = vsyncpa [#allocation7], 1
    %161 = vsyncpa [#allocation5], 1

</llo_original>
